<compile_context>
chip_gen: v5e
topology: v5e:2x2
jax: 0.10.0
libtpu: 0.0.40
codegen_flags: <defaults>
</compile_context>

<pallas_src>
import functools

import jax
import jax.numpy as jnp
from jax import lax
from jax.experimental import pallas as pl
from jax.experimental.pallas import tpu as pltpu

NUM_VIEWS = 4
MARGIN = 0.3
DIST_EPS = 1e-12          # torch .clamp(min=1e-12) before sqrt
NORM_EPS = 1e-12          # F.normalize(eps=1e-12)
SIM_LO, SIM_HI = 0.0005, 0.9995


def _decoupling_loss_kernel(shared_ref, specific_ref, out_ref, *, b_valid, tile):
    sh = shared_ref[...].astype(jnp.float32)      # (T, D)
    sp = specific_ref[...].astype(jnp.float32)    # (T, D)
    t = sh.shape[0]

    # ---- L2 normalize: rsqrt on a (T,1) column + VPU broadcast multiply -------
    def l2_normalize(x):
        sumsq = jnp.sum(x * x, axis=1, keepdims=True)                    # (T, 1)
        inv = lax.rsqrt(jnp.maximum(sumsq, NORM_EPS * NORM_EPS))         # == 1/max(||x||, eps)
        return x * inv

    sh_n = l2_normalize(sh)
    sp_n = l2_normalize(sp)

    # A @ B^T on the MXU without materialized transposed operands.
    dn = (((1,), (1,)), ((), ()))
    sim = lax.dot_general(sh_n, sp_n, dn, preferred_element_type=jnp.float32)   # (T,T)
    gram = lax.dot_general(sh_n, sh_n, dn, preferred_element_type=jnp.float32)  # (T,T)

    # Chunk structure: (i ^ j) < 4  <=>  i // 4 == j // 4  (NUM_VIEWS == 4).
    rid = lax.broadcasted_iota(jnp.int32, (t, t), 0)
    cid = lax.broadcasted_iota(jnp.int32, (t, t), 1)
    xo = rid ^ cid
    same_chunk = xo < NUM_VIEWS
    off_diag_same = jnp.logical_and(same_chunk, xo > 0)

    # ---------------- SharedSpecialLoss ----------------
    # Only the 4 same-chunk lanes of each row matter.  Pull them out with 4
    # masked add-reductions, multiply the four (T,1) columns and take ONE log
    # per row:  -log(prod_k (1 - sim_ik)) == sum_k -log(1 - sim_ik).
    # (product of 4 factors >= 0.0005^4 ≈ 6e-14 — far above f32 underflow.)
    col_mod = cid & (NUM_VIEWS - 1)
    prod = jnp.ones((t, 1), dtype=jnp.float32)
    for k in range(NUM_VIEWS):                       # static 4-way unroll
        sel = jnp.logical_and(same_chunk, col_mod == k)
        ck = jnp.sum(jnp.where(sel, sim, 0.0), axis=1, keepdims=True)    # (T, 1)
        ck = jnp.clip(ck, SIM_LO, SIM_HI)
        prod = prod * (1.0 - ck)
    special_rows = -jnp.log(prod)                                        # (T, 1)

    # ---------------- SharedSharedLoss ----------------
    # Rows are unit-norm => d2 = 2 - 2*gram.  sqrt(2-2g) is monotone decreasing
    # in g, so the row-wise max distance over the off-diagonal 4x4 block is
    # sqrt(max(2 - 2*min_offdiag(gram), eps)).  sqrt/relu run on (T,1) only.
    masked_gram = jnp.where(off_diag_same, gram, 2.0)    # 2.0 > any cosine sim
    row_min = jnp.min(masked_gram, axis=1, keepdims=True)                # (T, 1)
    d2 = jnp.maximum(2.0 - 2.0 * row_min, DIST_EPS)
    ranking_rows = jnp.maximum(jnp.sqrt(d2) + MARGIN, 0.0)               # (T, 1)

    # ---------------- padded-row masking (only traced when padding exists) -----
    if b_valid % tile != 0:
        row_id = pl.program_id(0) * tile + lax.broadcasted_iota(jnp.int32, (t, 1), 0)
        valid = row_id < b_valid
        special_rows = jnp.where(valid, special_rows, 0.0)
        ranking_rows = jnp.where(valid, ranking_rows, 0.0)

    special = jnp.sum(special_rows, axis=0, keepdims=True)               # (1, 1)
    shared_c = jnp.sum(ranking_rows, axis=0, keepdims=True)              # (1, 1)
    partial = (special / float(NUM_VIEWS * NUM_VIEWS)
               + 0.01 * (shared_c / float(NUM_VIEWS)))                   # (1, 1)

    # Lane/sublane-dense per-tile partial: one native (8,128) tile, unmasked
    # store.  The grid axis is "parallel" (each tile owns its block), so tiles
    # can shard across TensorCores; the wrapper sums the partials.
    out_ref[...] = jnp.broadcast_to(partial, out_ref.shape)


def _pick_tile(batch, max_tile):
    """Row tile (multiple of 8 when < batch) and the padded batch it implies."""
    if batch <= max_tile:
        return batch, batch
    start = max(max_tile - (max_tile % 8), 8)
    for tile in range(start, 7, -8):             # multiples of 8 (hence of 4)
        if batch % tile == 0:
            return tile, batch
    # No clean divisor: pad + mask instead of a monolithic O(B^2) tile.
    tile = start
    padded = ((batch + tile - 1) // tile) * tile
    return tile, padded


def decoupling_loss(shared_features, specific_features, max_tile=256):
    B, D = shared_features.shape
    assert B % NUM_VIEWS == 0, "batch must be a multiple of num_views=4"
    assert specific_features.shape == (B, D)

    # Keep the per-tile footprint well under v7x's 64 MiB physical VMEM.
    budget = 40 * 1024 * 1024
    while max_tile > 8 and (2 * 2 * max_tile * D * 4 + 16 * max_tile * max_tile * 4) > budget:
        max_tile //= 2

    tb, b_pad = _pick_tile(B, max_tile)
    if b_pad != B:
        pad = b_pad - B
        shared_features = jnp.pad(shared_features, ((0, pad), (0, 0)))
        specific_features = jnp.pad(specific_features, ((0, pad), (0, 0)))
    num_tiles = b_pad // tb

    # Real footprint: 2 inputs x 2 pipeline buffers x (tb, D) f32 plus a handful
    # of (tb, tb) f32/i32 temporaries; clamp to [16, 48] MiB (v7x physical = 64).
    vmem_bytes = 2 * 2 * tb * D * 4 + 16 * tb * tb * 4 + (4 << 20)
    vmem_limit = int(min(max(vmem_bytes, 16 << 20), 48 << 20))

    kernel = functools.partial(_decoupling_loss_kernel, b_valid=B, tile=tb)
    partials = pl.pallas_call(
        kernel,
        out_shape=jax.ShapeDtypeStruct((num_tiles, 8, 128), jnp.float32),
        grid_spec=pltpu.PrefetchScalarGridSpec(
            num_scalar_prefetch=0,
            grid=(num_tiles,),
            in_specs=[
                pl.BlockSpec((tb, D), lambda i: (i, 0)),
                pl.BlockSpec((tb, D), lambda i: (i, 0)),
            ],
            out_specs=pl.BlockSpec((1, 8, 128), lambda i: (i, 0, 0)),
        ),
        compiler_params=pltpu.CompilerParams(
            dimension_semantics=("parallel",),          # independent per-tile partials
            vmem_limit_bytes=vmem_limit,
        ),
    )(shared_features, specific_features)
    return jnp.sum(partials[:, 0, 0])


# ------------------ pure-JAX reference (mirrors the PyTorch code) ------------------
def _reference_loss(shared, specific):
    def normalize(x):
        n = jnp.sqrt(jnp.sum(x * x, axis=1, keepdims=True))
        return x / jnp.maximum(n, NORM_EPS)

    B = shared.shape[0]
    chunks = B // NUM_VIEWS
    special = 0.0
    shared_c = 0.0
    for i in range(chunks):
        a = shared[NUM_VIEWS * i:NUM_VIEWS * (i + 1)]
        b = specific[NUM_VIEWS * i:NUM_VIEWS * (i + 1)]
        an, bn = normalize(a), normalize(b)
        sim = jnp.clip(an @ bn.T, SIM_LO, SIM_HI)
        special = special + jnp.mean(-jnp.log(1.0 - sim))

        an2 = normalize(a)
        sq = jnp.sum(an2 ** 2, axis=1, keepdims=True)
        d2 = sq + sq.T - 2.0 * (an2 @ an2.T)
        dist = jnp.sqrt(jnp.maximum(d2, DIST_EPS))
        mask = ~jnp.eye(NUM_VIEWS, dtype=bool)
        nd = dist[mask].reshape(NUM_VIEWS, NUM_VIEWS - 1)
        max_dist = jnp.max(nd, axis=1)
        shared_c = shared_c + jnp.mean(jnp.maximum(max_dist + MARGIN, 0.0))
    return special + 0.01 * shared_c


if __name__ == "__main__":
    key = jax.random.PRNGKey(0)
    k1, k2, k3, k4 = jax.random.split(key, 4)

    # small shapes: batch = num_views(4) * chunk_size(4), feature dim 32
    B, D = 16, 32
    shared = jax.random.normal(k1, (B, D), dtype=jnp.float32)
    specific = jax.random.normal(k2, (B, D), dtype=jnp.float32)
    ref = _reference_loss(shared, specific)

    # single-tile path (B <= max_tile)
    loss_single = decoupling_loss(shared, specific)
    jax.block_until_ready(loss_single)
    assert jnp.allclose(loss_single, ref, atol=1e-5, rtol=1e-5), (loss_single, ref)

    # multi-tile "parallel" path (exercises the per-tile partial outputs)
    loss_tiled = decoupling_loss(shared, specific, max_tile=8)
    jax.block_until_ready(loss_tiled)
    assert jnp.allclose(loss_tiled, ref, atol=1e-5, rtol=1e-5), (loss_tiled, ref)

    # batch that is a multiple of 4 but not of the tile: pad + valid-row-mask path
    B2 = 20
    shared2 = jax.random.normal(k3, (B2, D), dtype=jnp.float32)
    specific2 = jax.random.normal(k4, (B2, D), dtype=jnp.float32)
    ref2 = _reference_loss(shared2, specific2)
    loss_pad = decoupling_loss(shared2, specific2, max_tile=8)
    jax.block_until_ready(loss_pad)
    assert jnp.allclose(loss_pad, ref2, atol=1e-5, rtol=1e-5), (loss_pad, ref2)

    print("KERNEL_OK")
</pallas_src>

<mosaic_0001>
module attributes {stable_mosaic.version = 11 : i64} {
  func.func @_decoupling_loss_kernel(%arg0: i32, %arg1: memref<16x32xf32, #tpu.memory_space<vmem>>, %arg2: memref<16x32xf32, #tpu.memory_space<vmem>>, %arg3: memref<1x8x128xf32, #tpu.memory_space<vmem>>) attributes {dimension_semantics = [#tpu.dimension_semantics<parallel>], iteration_bounds = array<i64: 1>, scalar_prefetch = 0 : i64, scratch_operands = 0 : i64, tpu.core_type = #tpu.core_type<tc>, window_params = [{transform_indices = @transform_0, window_bounds = array<i64: 16, 32>}, {transform_indices = @transform_1, window_bounds = array<i64: 16, 32>}, {transform_indices = @transform_2, window_bounds = array<i64: 1, 8, 128>}]} {
    %c0 = arith.constant 0 : index
    %c0_0 = arith.constant 0 : index
    %0 = vector.load %arg1[%c0, %c0_0] : memref<16x32xf32, #tpu.memory_space<vmem>>, vector<16x32xf32>
    %c0_1 = arith.constant 0 : index
    %c0_2 = arith.constant 0 : index
    %1 = vector.load %arg2[%c0_1, %c0_2] : memref<16x32xf32, #tpu.memory_space<vmem>>, vector<16x32xf32>
    %2 = arith.mulf %0, %0 : vector<16x32xf32>
    %cst = arith.constant dense<0.000000e+00> : vector<16xf32>
    %3 = vector.multi_reduction <add>, %2, %cst [1] : vector<16x32xf32> to vector<16xf32>
    %4 = vector.shape_cast %3 : vector<16xf32> to vector<16x1xf32>
    %cst_3 = arith.constant 1.000000e-24 : f32
    %5 = vector.broadcast %cst_3 : f32 to vector<16x1xf32>
    %6 = arith.maximumf %4, %5 : vector<16x1xf32>
    %7 = math.rsqrt %6 : vector<16x1xf32>
    %8 = vector.broadcast %7 : vector<16x1xf32> to vector<16x32xf32>
    %9 = arith.mulf %0, %8 : vector<16x32xf32>
    %10 = arith.mulf %1, %1 : vector<16x32xf32>
    %cst_4 = arith.constant dense<0.000000e+00> : vector<16xf32>
    %11 = vector.multi_reduction <add>, %10, %cst_4 [1] : vector<16x32xf32> to vector<16xf32>
    %12 = vector.shape_cast %11 : vector<16xf32> to vector<16x1xf32>
    %cst_5 = arith.constant 1.000000e-24 : f32
    %13 = vector.broadcast %cst_5 : f32 to vector<16x1xf32>
    %14 = arith.maximumf %12, %13 : vector<16x1xf32>
    %15 = math.rsqrt %14 : vector<16x1xf32>
    %16 = vector.broadcast %15 : vector<16x1xf32> to vector<16x32xf32>
    %17 = arith.mulf %1, %16 : vector<16x32xf32>
    %cst_6 = arith.constant dense<0.000000e+00> : vector<16x16xf32>
    %18 = tpu.matmul %9, %17, %cst_6 {dimension_numbers = #tpu.dot_dimension_numbers<[1], [1], [0], [0], [0, 0, 1, 0], [], []>} : vector<16x32xf32>, vector<16x32xf32>, vector<16x16xf32> -> vector<16x16xf32>
    %cst_7 = arith.constant dense<0.000000e+00> : vector<16x16xf32>
    %19 = tpu.matmul %9, %9, %cst_7 {dimension_numbers = #tpu.dot_dimension_numbers<[1], [1], [0], [0], [0, 0, 1, 0], [], []>} : vector<16x32xf32>, vector<16x32xf32>, vector<16x16xf32> -> vector<16x16xf32>
    %20 = tpu.iota {dimensions = array<i32: 0>} : vector<16x16xi32>
    %21 = tpu.iota {dimensions = array<i32: 1>} : vector<16x16xi32>
    %22 = arith.xori %20, %21 : vector<16x16xi32>
    %c4_i32 = arith.constant 4 : i32
    %23 = vector.broadcast %c4_i32 : i32 to vector<16x16xi32>
    %24 = arith.cmpi slt, %22, %23 : vector<16x16xi32>
    %c0_i32 = arith.constant 0 : i32
    %25 = vector.broadcast %c0_i32 : i32 to vector<16x16xi32>
    %26 = arith.cmpi sgt, %22, %25 : vector<16x16xi32>
    %27 = arith.andi %24, %26 : vector<16x16xi1>
    %c3_i32 = arith.constant 3 : i32
    %28 = vector.broadcast %c3_i32 : i32 to vector<16x16xi32>
    %29 = arith.andi %21, %28 : vector<16x16xi32>
    %cst_8 = arith.constant 1.000000e+00 : f32
    %30 = vector.broadcast %cst_8 : f32 to vector<16x1xf32>
    %c0_i32_9 = arith.constant 0 : i32
    %31 = vector.broadcast %c0_i32_9 : i32 to vector<16x16xi32>
    %32 = arith.cmpi eq, %29, %31 : vector<16x16xi32>
    %33 = arith.andi %24, %32 : vector<16x16xi1>
    %cst_10 = arith.constant 0.000000e+00 : f32
    %34 = vector.broadcast %cst_10 : f32 to vector<16x16xf32>
    %35 = arith.select %33, %18, %34 : vector<16x16xi1>, vector<16x16xf32>
    %cst_11 = arith.constant dense<0.000000e+00> : vector<16xf32>
    %36 = vector.multi_reduction <add>, %35, %cst_11 [1] : vector<16x16xf32> to vector<16xf32>
    %37 = vector.shape_cast %36 : vector<16xf32> to vector<16x1xf32>
    %cst_12 = arith.constant 5.000000e-04 : f32
    %cst_13 = arith.constant 0.999499976 : f32
    %38 = vector.broadcast %cst_12 : f32 to vector<16x1xf32>
    %39 = arith.maximumf %38, %37 : vector<16x1xf32>
    %40 = vector.broadcast %cst_13 : f32 to vector<16x1xf32>
    %41 = arith.minimumf %40, %39 : vector<16x1xf32>
    %cst_14 = arith.constant 1.000000e+00 : f32
    %42 = vector.broadcast %cst_14 : f32 to vector<16x1xf32>
    %43 = arith.subf %42, %41 : vector<16x1xf32>
    %44 = arith.mulf %30, %43 : vector<16x1xf32>
    %c1_i32 = arith.constant 1 : i32
    %45 = vector.broadcast %c1_i32 : i32 to vector<16x16xi32>
    %46 = arith.cmpi eq, %29, %45 : vector<16x16xi32>
    %47 = arith.andi %24, %46 : vector<16x16xi1>
    %cst_15 = arith.constant 0.000000e+00 : f32
    %48 = vector.broadcast %cst_15 : f32 to vector<16x16xf32>
    %49 = arith.select %47, %18, %48 : vector<16x16xi1>, vector<16x16xf32>
    %cst_16 = arith.constant dense<0.000000e+00> : vector<16xf32>
    %50 = vector.multi_reduction <add>, %49, %cst_16 [1] : vector<16x16xf32> to vector<16xf32>
    %51 = vector.shape_cast %50 : vector<16xf32> to vector<16x1xf32>
    %cst_17 = arith.constant 5.000000e-04 : f32
    %cst_18 = arith.constant 0.999499976 : f32
    %52 = vector.broadcast %cst_17 : f32 to vector<16x1xf32>
    %53 = arith.maximumf %52, %51 : vector<16x1xf32>
    %54 = vector.broadcast %cst_18 : f32 to vector<16x1xf32>
    %55 = arith.minimumf %54, %53 : vector<16x1xf32>
    %cst_19 = arith.constant 1.000000e+00 : f32
    %56 = vector.broadcast %cst_19 : f32 to vector<16x1xf32>
    %57 = arith.subf %56, %55 : vector<16x1xf32>
    %58 = arith.mulf %44, %57 : vector<16x1xf32>
    %c2_i32 = arith.constant 2 : i32
    %59 = vector.broadcast %c2_i32 : i32 to vector<16x16xi32>
    %60 = arith.cmpi eq, %29, %59 : vector<16x16xi32>
    %61 = arith.andi %24, %60 : vector<16x16xi1>
    %cst_20 = arith.constant 0.000000e+00 : f32
    %62 = vector.broadcast %cst_20 : f32 to vector<16x16xf32>
    %63 = arith.select %61, %18, %62 : vector<16x16xi1>, vector<16x16xf32>
    %cst_21 = arith.constant dense<0.000000e+00> : vector<16xf32>
    %64 = vector.multi_reduction <add>, %63, %cst_21 [1] : vector<16x16xf32> to vector<16xf32>
    %65 = vector.shape_cast %64 : vector<16xf32> to vector<16x1xf32>
    %cst_22 = arith.constant 5.000000e-04 : f32
    %cst_23 = arith.constant 0.999499976 : f32
    %66 = vector.broadcast %cst_22 : f32 to vector<16x1xf32>
    %67 = arith.maximumf %66, %65 : vector<16x1xf32>
    %68 = vector.broadcast %cst_23 : f32 to vector<16x1xf32>
    %69 = arith.minimumf %68, %67 : vector<16x1xf32>
    %cst_24 = arith.constant 1.000000e+00 : f32
    %70 = vector.broadcast %cst_24 : f32 to vector<16x1xf32>
    %71 = arith.subf %70, %69 : vector<16x1xf32>
    %72 = arith.mulf %58, %71 : vector<16x1xf32>
    %c3_i32_25 = arith.constant 3 : i32
    %73 = vector.broadcast %c3_i32_25 : i32 to vector<16x16xi32>
    %74 = arith.cmpi eq, %29, %73 : vector<16x16xi32>
    %75 = arith.andi %24, %74 : vector<16x16xi1>
    %cst_26 = arith.constant 0.000000e+00 : f32
    %76 = vector.broadcast %cst_26 : f32 to vector<16x16xf32>
    %77 = arith.select %75, %18, %76 : vector<16x16xi1>, vector<16x16xf32>
    %cst_27 = arith.constant dense<0.000000e+00> : vector<16xf32>
    %78 = vector.multi_reduction <add>, %77, %cst_27 [1] : vector<16x16xf32> to vector<16xf32>
    %79 = vector.shape_cast %78 : vector<16xf32> to vector<16x1xf32>
    %cst_28 = arith.constant 5.000000e-04 : f32
    %cst_29 = arith.constant 0.999499976 : f32
    %80 = vector.broadcast %cst_28 : f32 to vector<16x1xf32>
    %81 = arith.maximumf %80, %79 : vector<16x1xf32>
    %82 = vector.broadcast %cst_29 : f32 to vector<16x1xf32>
    %83 = arith.minimumf %82, %81 : vector<16x1xf32>
    %cst_30 = arith.constant 1.000000e+00 : f32
    %84 = vector.broadcast %cst_30 : f32 to vector<16x1xf32>
    %85 = arith.subf %84, %83 : vector<16x1xf32>
    %86 = arith.mulf %72, %85 : vector<16x1xf32>
    %87 = math.log %86 : vector<16x1xf32>
    %cst_31 = arith.constant 0.000000e+00 : f32
    %88 = vector.broadcast %cst_31 : f32 to vector<16x1xf32>
    %89 = arith.subf %88, %87 : vector<16x1xf32>
    %cst_32 = arith.constant 2.000000e+00 : f32
    %90 = vector.broadcast %cst_32 : f32 to vector<16x16xf32>
    %91 = arith.select %27, %19, %90 : vector<16x16xi1>, vector<16x16xf32>
    %cst_33 = arith.constant dense<0x7F800000> : vector<16xf32>
    %92 = vector.multi_reduction <minimumf>, %91, %cst_33 [1] : vector<16x16xf32> to vector<16xf32>
    %93 = vector.shape_cast %92 : vector<16xf32> to vector<16x1xf32>
    %cst_34 = arith.constant 2.000000e+00 : f32
    %94 = vector.broadcast %cst_34 : f32 to vector<16x1xf32>
    %95 = arith.mulf %94, %93 : vector<16x1xf32>
    %cst_35 = arith.constant 2.000000e+00 : f32
    %96 = vector.broadcast %cst_35 : f32 to vector<16x1xf32>
    %97 = arith.subf %96, %95 : vector<16x1xf32>
    %cst_36 = arith.constant 9.99999996E-13 : f32
    %98 = vector.broadcast %cst_36 : f32 to vector<16x1xf32>
    %99 = arith.maximumf %97, %98 : vector<16x1xf32>
    %100 = math.sqrt %99 : vector<16x1xf32>
    %cst_37 = arith.constant 3.000000e-01 : f32
    %101 = vector.broadcast %cst_37 : f32 to vector<16x1xf32>
    %102 = arith.addf %100, %101 : vector<16x1xf32>
    %cst_38 = arith.constant 0.000000e+00 : f32
    %103 = vector.broadcast %cst_38 : f32 to vector<16x1xf32>
    %104 = arith.maximumf %102, %103 : vector<16x1xf32>
    %cst_39 = arith.constant dense<0.000000e+00> : vector<1xf32>
    %105 = vector.multi_reduction <add>, %89, %cst_39 [0] : vector<16x1xf32> to vector<1xf32>
    %106 = vector.shape_cast %105 : vector<1xf32> to vector<1x1xf32>
    %cst_40 = arith.constant dense<0.000000e+00> : vector<1xf32>
    %107 = vector.multi_reduction <add>, %104, %cst_40 [0] : vector<16x1xf32> to vector<1xf32>
    %108 = vector.shape_cast %107 : vector<1xf32> to vector<1x1xf32>
    %cst_41 = arith.constant 1.600000e+01 : f32
    %109 = vector.broadcast %cst_41 : f32 to vector<1x1xf32>
    %110 = arith.divf %106, %109 : vector<1x1xf32>
    %cst_42 = arith.constant 4.000000e+00 : f32
    %111 = vector.broadcast %cst_42 : f32 to vector<1x1xf32>
    %112 = arith.divf %108, %111 : vector<1x1xf32>
    %cst_43 = arith.constant 0.00999999977 : f32
    %113 = vector.broadcast %cst_43 : f32 to vector<1x1xf32>
    %114 = arith.mulf %113, %112 : vector<1x1xf32>
    %115 = arith.addf %110, %114 : vector<1x1xf32>
    %116 = vector.shape_cast %115 : vector<1x1xf32> to vector<1x1x1xf32>
    %117 = vector.broadcast %116 : vector<1x1x1xf32> to vector<1x8x128xf32>
    %c0_44 = arith.constant 0 : index
    %c0_45 = arith.constant 0 : index
    %c0_46 = arith.constant 0 : index
    %118 = vector.load %arg3[%c0_44, %c0_45, %c0_46] : memref<1x8x128xf32, #tpu.memory_space<vmem>>, vector<1x8x128xf32>
    tpu.vector_store %arg3[%c0_44, %c0_45, %c0_46], %117 {strides = array<i32>} : memref<1x8x128xf32, #tpu.memory_space<vmem>>, vector<1x8x128xf32>,
    return
  }
  func.func @transform_0(%arg0: i32) -> (i32, i32) {
    %c0_i32 = arith.constant 0 : i32
    %c0_i32_0 = arith.constant 0 : i32
    return %arg0, %c0_i32 : i32, i32
  }
  func.func @transform_1(%arg0: i32) -> (i32, i32) {
    %c0_i32 = arith.constant 0 : i32
    %c0_i32_0 = arith.constant 0 : i32
    return %arg0, %c0_i32 : i32, i32
  }
  func.func @transform_2(%arg0: i32) -> (i32, i32, i32) {
    %c0_i32 = arith.constant 0 : i32
    %c0_i32_0 = arith.constant 0 : i32
    %c0_i32_1 = arith.constant 0 : i32
    return %arg0, %c0_i32, %c0_i32_0 : i32, i32, i32
  }
}

</mosaic_0001>

<llo_original>
// kernel: tpu_custom_call.1
$region0: #{tpu_custom_call.1}
  #allocation0 [shape = 'u32[]', space=smem, size = 0x4, offset = 0x4, fixed_abs, tag = 'smem constant byte address 0x4 - core index']
  #allocation1 [shape = 'u32[72,128]{1,0:T(1,128)}', space=vmem, size = 0x9000, scoped, tag = 'internal scratch']
  %s0 = inlined_call_operand.hbm [shape: f32[16,32], index: 0, kind: input, shape index: {}]
  %s1 = inlined_call_operand.hbm [shape: f32[16,32], index: 1, kind: input, shape index: {}]
  %s2 = inlined_call_operand.hbm [shape: f32[1,8,128], index: 2, kind: output, shape index: {}]
  %s3 = sld [smem:[#allocation0]]
  $region26: #{tpu_custom_call.1} parent=0
    _
  %s5 = ssub.s32 1, %s3
  %s6 = scalar_select 0, %s5, %s3
  $region1: #{tpu_custom_call.1} parent=0
    #allocation2 [shape = 'u8[8192]{0}', space=vmem, size = 0x2000, scoped, tag = 'input window, operand 0, single buffered']
    #allocation3 [shape = 's32[1]{0}', space=sflag, size = 0x4, scoped, tag = 'scoped memory for tpu_custom_call.1']
    #allocation4 [shape = 's32[1]{0}', space=sflag, size = 0x4, scoped, tag = 'scoped memory for tpu_custom_call.1']
    #allocation5 [shape = 'u8[8192]{0}', space=vmem, size = 0x2000, scoped, tag = 'input window, operand 1, single buffered']
    #allocation6 [shape = 's32[1]{0}', space=sflag, size = 0x4, scoped, tag = 'scoped memory for tpu_custom_call.1']
    #allocation7 [shape = 'u8[4096]{0}', space=vmem, size = 0x1000, scoped, tag = 'output window, operand 0, single buffered']
    %7 = vsyncpa [#allocation3], 0
    %8 = vsyncpa [#allocation6], 0
    %9 = vsyncpa [#allocation4], 0
    // Predicated region
    $region2: #{tpu_custom_call.1} parent=1 // pred_check
      _
    $region3: #{tpu_custom_call.1} parent=1 // pred_check_branch
      %11 = sbr.rel (0) target = $region5
    $region4: #{tpu_custom_call.1} parent=1 // pred_region
      %13 = vsyncadd [#allocation3], 0
      %s14 = sshll.u32 %s0, 4
      %s15 = int_to_ptr.hbm [resolvable:$true] %s14
      %s16 = sshll.u32 [#allocation2], 4
      %s17 = int_to_ptr.vmem [resolvable:$true] %s16
      %22 = dma.hbm_to_vmem [thread:$0]  %s15, 256, %s17, [#allocation3], 128, 128, 8
    $region5: #{tpu_custom_call.1} parent=1 // pred_fallthru
      _
    // Predicated region
    $region6: #{tpu_custom_call.1} parent=1 // pred_check
      _
    $region7: #{tpu_custom_call.1} parent=1 // pred_check_branch
      %24 = sbr.rel (0) target = $region9
    $region8: #{tpu_custom_call.1} parent=1 // pred_region
      %26 = vsyncadd [#allocation6], 0
      %s27 = sshll.u32 %s1, 4
      %s28 = int_to_ptr.hbm [resolvable:$true] %s27
      %s29 = sshll.u32 [#allocation5], 4
      %s30 = int_to_ptr.vmem [resolvable:$true] %s29
      %35 = dma.hbm_to_vmem [thread:$0]  %s28, 256, %s30, [#allocation6], 128, 128, 8
    $region9: #{tpu_custom_call.1} parent=1 // pred_fallthru
      _
    // Predicated region
    $region10: #{tpu_custom_call.1} parent=1 // pred_check
      _
    $region11: #{tpu_custom_call.1} parent=1 // pred_check_branch
      %37 = sbr.rel (0) target = $region13
    $region12: #{tpu_custom_call.1} parent=1 // pred_region
      %39 = dma.done [#allocation3], 256
    $region13: #{tpu_custom_call.1} parent=1 // pred_fallthru
      _
    // Predicated region
    $region14: #{tpu_custom_call.1} parent=1 // pred_check
      _
    $region15: #{tpu_custom_call.1} parent=1 // pred_check_branch
      %41 = sbr.rel (0) target = $region17
    $region16: #{tpu_custom_call.1} parent=1 // pred_region
      %43 = dma.done [#allocation6], 256
    $region17: #{tpu_custom_call.1} parent=1 // pred_fallthru
      _
    %v44 = vld [vmem:[#allocation2] sm:$0xff]
    %v45 = vld [vmem:[#allocation2 + $0x8] sm:$0xff]
    %v46 = vld [vmem:[#allocation5] sm:$0xff]
    %v47 = vld [vmem:[#allocation5 + $0x8] sm:$0xff]
    %v48 = vmul.f32 %v44, %v44
    %v49 = vmul.f32 %v45, %v45
    %vm50 = vcmask 261120
    %v51 = vsel %vm50, %v48, 0.0
    %52 = vadd.xlane.f32.xlu0 %v51
    %v53 = vpop.xlane.xlu0 %52
    %v54 = vsel %vm50, %v49, 0.0
    %55 = vadd.xlane.f32.xlu0 %v54
    %v56 = vpop.xlane.xlu0 %55
    %v57 = vmax.f32 %v53, 1e-24
    %v58 = vmax.f32 %v56, 1e-24
    %v59 = vrsqrt.pop %v57
    %v60 = vmul.f32 %v59, %v57
    %v61 = vmul.f32 %v60, %v59
    %v62 = vmul.f32 0.5, %v61
    %v63 = vsub.f32 1.5, %v62
    %v64 = vmul.f32 %v59, %v63
    %vm65 = vweird.f32 %v57
    %vm66 = vweird.f32 %v59
    %vm67 = vmor %vm65, %vm66
    %v68 = vsel %vm67, %v59, %v64
    %v69 = vrsqrt.pop %v58
    %v70 = vmul.f32 %v69, %v58
    %v71 = vmul.f32 %v70, %v69
    %v72 = vmul.f32 0.5, %v71
    %v73 = vsub.f32 1.5, %v72
    %v74 = vmul.f32 %v69, %v73
    %vm75 = vweird.f32 %v58
    %vm76 = vweird.f32 %v69
    %vm77 = vmor %vm75, %vm76
    %v78 = vsel %vm77, %v69, %v74
    %v79 = vmul.f32 %v44, %v68
    %v80 = vmul.f32 %v45, %v78
    %v81 = vmul.f32 %v46, %v46
    %v82 = vmul.f32 %v47, %v47
    %v83 = vsel %vm50, %v81, 0.0
    %84 = vadd.xlane.f32.xlu0 %v83
    %v85 = vpop.xlane.xlu0 %84
    %v86 = vsel %vm50, %v82, 0.0
    %87 = vadd.xlane.f32.xlu0 %v86
    %v88 = vpop.xlane.xlu0 %87
    %v89 = vmax.f32 %v85, 1e-24
    %v90 = vmax.f32 %v88, 1e-24
    %v91 = vrsqrt.pop %v89
    %v92 = vmul.f32 %v91, %v89
    %v93 = vmul.f32 %v92, %v91
    %v94 = vmul.f32 0.5, %v93
    %v95 = vsub.f32 1.5, %v94
    %v96 = vmul.f32 %v91, %v95
    %vm97 = vweird.f32 %v89
    %vm98 = vweird.f32 %v91
    %vm99 = vmor %vm97, %vm98
    %v100 = vsel %vm99, %v91, %v96
    %v101 = vrsqrt.pop %v90
    %v102 = vmul.f32 %v101, %v90
    %v103 = vmul.f32 %v102, %v101
    %v104 = vmul.f32 0.5, %v103
    %v105 = vsub.f32 1.5, %v104
    %v106 = vmul.f32 %v101, %v105
    %vm107 = vweird.f32 %v90
    %vm108 = vweird.f32 %v101
    %vm109 = vmor %vm107, %vm108
    %v110 = vsel %vm109, %v101, %v106
    %v111 = vmul.f32 %v46, %v100
    %v112 = vmul.f32 %v47, %v110
    %v114 = vsel %vm50, %v79, 0
    %v117 = vsel %vm50, %v80, 0
    %v120 = vsel %vm50, %v111, 0
    %v123 = vsel %vm50, %v112, 0
    %125 = vmatpush.xpose.msra.mxu0 0.0
    %126 = vmatpush.xpose.msra.mxu0 0.0
    %127 = vmatpush.xpose.msra.mxu0 0.0
    %128 = vmatpush.xpose.msra.mxu0 0.0
    %129 = vmatpush.xpose.msra.mxu0 0.0
    %130 = vmatpush.xpose.msra.mxu0 0.0
    %131 = vmatpush.xpose.msra.mxu0 0.0
    %132 = vmatpush.xpose.msra.mxu0 0.0
    %133 = vmatpush.xpose.msra.mxu0 0.0
    %134 = vmatpush.xpose.msra.mxu0 0.0
    %135 = vmatpush.xpose.msra.mxu0 0.0
    %136 = vmatpush.xpose.msra.mxu0 0.0
    %137 = vmatpush.xpose.msra.mxu0 0.0
    %138 = vmatpush.xpose.msra.mxu0 0.0
    %139 = vmatpush.xpose.msra.mxu0 %v123
    %140 = vmatpush.xpose.msra.mxu0 %v120
    %141 = vmatmul.f32.gmra.mxu0 %v114
    %v142 = vpop.f32.mrf.mxu0
    %v143 = vadd.f32 0.0, %v142
    %144 = vmatmul.f32.gmra.mxu0 %v117
    %v145 = vpop.f32.mrf.mxu0
    %v146 = vadd.f32 0.0, %v145
    %147 = vdwg.mxu0
    %148 = vmatpush.xpose.msra.mxu0 0.0
    %149 = vmatpush.xpose.msra.mxu0 0.0
    %150 = vmatpush.xpose.msra.mxu0 0.0
    %151 = vmatpush.xpose.msra.mxu0 0.0
    %152 = vmatpush.xpose.msra.mxu0 0.0
    %153 = vmatpush.xpose.msra.mxu0 0.0
    %154 = vmatpush.xpose.msra.mxu0 0.0
    %155 = vmatpush.xpose.msra.mxu0 0.0
    %156 = vmatpush.xpose.msra.mxu0 0.0
    %157 = vmatpush.xpose.msra.mxu0 0.0
    %158 = vmatpush.xpose.msra.mxu0 0.0
    %159 = vmatpush.xpose.msra.mxu0 0.0
    %160 = vmatpush.xpose.msra.mxu0 0.0
    %161 = vmatpush.xpose.msra.mxu0 0.0
    %162 = vmatpush.xpose.msra.mxu0 %v117
    %163 = vmatpush.xpose.msra.mxu0 %v114
    %164 = vmatmul.f32.gmra.mxu0 %v114
    %v165 = vpop.f32.mrf.mxu0
    %v166 = vadd.f32 0.0, %v165
    %167 = vmatmul.f32.gmra.mxu0 %v117
    %v168 = vpop.f32.mrf.mxu0
    %v169 = vadd.f32 0.0, %v168
    %170 = vdwg.mxu0
    %v171 = vlaneseq
    %v172 = vshrl.u32 %v171, 7
    %v173 = vadd.s32 %v172, 8
    %v174 = vlaneseq
    %v175 = vand.u32 %v174, 127
    %v176 = vxor.u32 %v172, %v175
    %v177 = vxor.u32 %v173, %v175
    %vm178 = vcmp.lt.s32.totalorder %v176, 4
    %vm179 = vcmp.lt.s32.totalorder %v177, 4
    %vm180 = vcmp.gt.s32.totalorder %v176, 0
    %vm181 = vcmp.gt.s32.totalorder %v177, 0
    %vm182 = vmand %vm178, %vm180
    %vm183 = vmand %vm179, %vm181
    %v184 = vand.u32 %v175, 3
    %vm185 = vcmp.eq.s32.totalorder %v184, 0
    %vm186 = vmand %vm178, %vm185
    %vm187 = vmand %vm179, %vm185
    %v188 = vsel %vm186, %v143, 0.0
    %v189 = vsel %vm187, %v146, 0.0
    %vm190 = vcmask 130048
    %v191 = vsel %vm190, %v188, 0.0
    %192 = vadd.xlane.f32.xlu0 %v191
    %v193 = vpop.xlane.xlu0 %192
    %v194 = vsel %vm190, %v189, 0.0
    %195 = vadd.xlane.f32.xlu0 %v194
    %v196 = vpop.xlane.xlu0 %195
    %v197 = vmax.f32 %v193, 0.0005
    %v198 = vmax.f32 %v196, 0.0005
    %v199 = vmin.f32 %v197, 0.9995
    %v200 = vmin.f32 %v198, 0.9995
    %v201 = vsub.f32 1.0, %v199
    %v202 = vsub.f32 1.0, %v200
    %vm203 = vcmp.eq.s32.totalorder %v184, 1
    %vm204 = vmand %vm178, %vm203
    %vm205 = vmand %vm179, %vm203
    %v206 = vsel %vm204, %v143, 0.0
    %v207 = vsel %vm205, %v146, 0.0
    %v208 = vsel %vm190, %v206, 0.0
    %209 = vadd.xlane.f32.xlu0 %v208
    %v210 = vpop.xlane.xlu0 %209
    %v211 = vsel %vm190, %v207, 0.0
    %212 = vadd.xlane.f32.xlu0 %v211
    %v213 = vpop.xlane.xlu0 %212
    %v214 = vmax.f32 %v210, 0.0005
    %v215 = vmax.f32 %v213, 0.0005
    %v216 = vmin.f32 %v214, 0.9995
    %v217 = vmin.f32 %v215, 0.9995
    %v218 = vsub.f32 1.0, %v216
    %v219 = vsub.f32 1.0, %v217
    %v220 = vmul.f32 %v201, %v218
    %v221 = vmul.f32 %v202, %v219
    %vm222 = vcmp.eq.s32.totalorder %v184, 2
    %vm223 = vmand %vm178, %vm222
    %vm224 = vmand %vm179, %vm222
    %v225 = vsel %vm223, %v143, 0.0
    %v226 = vsel %vm224, %v146, 0.0
    %v227 = vsel %vm190, %v225, 0.0
    %228 = vadd.xlane.f32.xlu0 %v227
    %v229 = vpop.xlane.xlu0 %228
    %v230 = vsel %vm190, %v226, 0.0
    %231 = vadd.xlane.f32.xlu0 %v230
    %v232 = vpop.xlane.xlu0 %231
    %v233 = vmax.f32 %v229, 0.0005
    %v234 = vmax.f32 %v232, 0.0005
    %v235 = vmin.f32 %v233, 0.9995
    %v236 = vmin.f32 %v234, 0.9995
    %v237 = vsub.f32 1.0, %v235
    %v238 = vsub.f32 1.0, %v236
    %v239 = vmul.f32 %v220, %v237
    %v240 = vmul.f32 %v221, %v238
    %vm241 = vcmp.eq.s32.totalorder %v184, 3
    %vm242 = vmand %vm178, %vm241
    %vm243 = vmand %vm179, %vm241
    %v244 = vsel %vm242, %v143, 0.0
    %v245 = vsel %vm243, %v146, 0.0
    %v246 = vsel %vm190, %v244, 0.0
    %247 = vadd.xlane.f32.xlu0 %v246
    %v248 = vpop.xlane.xlu0 %247
    %v249 = vsel %vm190, %v245, 0.0
    %250 = vadd.xlane.f32.xlu0 %v249
    %v251 = vpop.xlane.xlu0 %250
    %v252 = vmax.f32 %v248, 0.0005
    %v253 = vmax.f32 %v251, 0.0005
    %v254 = vmin.f32 %v252, 0.9995
    %v255 = vmin.f32 %v253, 0.9995
    %v256 = vsub.f32 1.0, %v254
    %v257 = vsub.f32 1.0, %v255
    %v258 = vmul.f32 %v239, %v256
    %v259 = vmul.f32 %v240, %v257
    %v260 = vlog2.pop %v258
    %v261 = vmul.f32 %v260, 0.6931472
    %v262 = vlog2.pop %v259
    %v263 = vmul.f32 %v262, 0.6931472
    %v264 = vsub.f32 0.0, %v261
    %v265 = vsub.f32 0.0, %v263
    %v266 = vsel %vm182, %v166, 2.0
    %v267 = vsel %vm183, %v169, 2.0
    %v268 = vsel %vm190, %v266, inf
    %269 = vmin.xlane.f32.xlu0 %v268
    %v270 = vpop.xlane.xlu0 %269
    %v271 = vsel %vm190, %v267, inf
    %272 = vmin.xlane.f32.xlu0 %v271
    %v273 = vpop.xlane.xlu0 %272
    %v274 = vmul.f32 %v270, 2.0
    %v275 = vmul.f32 %v273, 2.0
    %v276 = vsub.f32 2.0, %v274
    %v277 = vsub.f32 2.0, %v275
    %v278 = vmax.f32 %v276, 1e-12
    %v279 = vmax.f32 %v277, 1e-12
    %v280 = vrsqrt.pop %v278
    %v281 = vmul.f32 %v280, %v278
    %v282 = vmul.f32 %v281, %v280
    %v283 = vmul.f32 0.5, %v282
    %v284 = vsub.f32 1.5, %v283
    %v285 = vmul.f32 %v280, %v284
    %v286 = vmul.f32 %v278, %v285
    %vm287 = vcmp.eq.f32.partialorder %v278, inf
    %v288 = vsel %vm287, %v278, %v286
    %vm289 = vcmp.eq.f32.partialorder %v278, 0.0
    %v290 = vand.u32 %v278, 2147483648
    %v291 = vsel %vm289, %v290, %v288
    %v292 = vrsqrt.pop %v279
    %v293 = vmul.f32 %v292, %v279
    %v294 = vmul.f32 %v293, %v292
    %v295 = vmul.f32 0.5, %v294
    %v296 = vsub.f32 1.5, %v295
    %v297 = vmul.f32 %v292, %v296
    %v298 = vmul.f32 %v279, %v297
    %vm299 = vcmp.eq.f32.partialorder %v279, inf
    %v300 = vsel %vm299, %v279, %v298
    %vm301 = vcmp.eq.f32.partialorder %v279, 0.0
    %v302 = vand.u32 %v279, 2147483648
    %v303 = vsel %vm301, %v302, %v300
    %v304 = vadd.f32 %v291, 0.3
    %v305 = vadd.f32 %v303, 0.3
    %v306 = vmax.f32 %v304, 0.0
    %v307 = vmax.f32 %v305, 0.0
    %v308 = vadd.f32 %v264, %v265
    %v309 = vrot.slane %v308, 4
    %v310 = vadd.f32 %v308, %v309
    %v311 = vrot.slane %v310, 2
    %v312 = vadd.f32 %v310, %v311
    %v313 = vrot.slane %v312, 1
    %v314 = vadd.f32 %v312, %v313
    %v315 = vadd.f32 %v306, %v307
    %v316 = vrot.slane %v315, 4
    %v317 = vadd.f32 %v315, %v316
    %v318 = vrot.slane %v317, 2
    %v319 = vadd.f32 %v317, %v318
    %v320 = vrot.slane %v319, 1
    %v321 = vadd.f32 %v319, %v320
    %v322 = vrcp.pop 16.0
    %v323 = vmul.f32 16.0, %v322
    %v324 = vsub.f32 1.0, %v323
    %v325 = vmul.f32 %v322, %v324
    %v326 = vadd.f32 %v322, %v325
    %vm327 = vweird.f32 %v322
    %v328 = vsel %vm327, %v322, %v326
    %v329 = vmul.f32 %v314, %v328
    %v330 = vrcp.pop 4.0
    %v331 = vmul.f32 4.0, %v330
    %v332 = vsub.f32 1.0, %v331
    %v333 = vmul.f32 %v330, %v332
    %v334 = vadd.f32 %v330, %v333
    %vm335 = vweird.f32 %v330
    %v336 = vsel %vm335, %v330, %v334
    %v337 = vmul.f32 %v321, %v336
    %v338 = vmul.f32 %v337, 0.01
    %v339 = vadd.f32 %v329, %v338
    %340 = vst [vmem:[#allocation7] sm:$0xff] %v339
    // Predicated region
    $region18: #{tpu_custom_call.1} parent=1 // pred_check
      _
    $region19: #{tpu_custom_call.1} parent=1 // pred_check_branch
      %342 = sbr.rel (0) target = $region21
    $region20: #{tpu_custom_call.1} parent=1 // pred_region
      %344 = vsyncadd [#allocation4], 0
      %s346 = sshll.u32 [#allocation7], 4
      %s347 = int_to_ptr.vmem [resolvable:$true] %s346
      %s348 = sshll.u32 %s2, 4
      %s349 = int_to_ptr.hbm [resolvable:$true] %s348
      %351 = dma.vmem_to_hbm [thread:$0]  %s347, 128, %s349, [#allocation4]
    $region21: #{tpu_custom_call.1} parent=1 // pred_fallthru
      _
    // Predicated region
    $region22: #{tpu_custom_call.1} parent=1 // pred_check
      _
    $region23: #{tpu_custom_call.1} parent=1 // pred_check_branch
      %353 = sbr.rel (0) target = $region25
    $region24: #{tpu_custom_call.1} parent=1 // pred_region
      %355 = dma.done [#allocation4], 128
    $region25: #{tpu_custom_call.1} parent=1 // pred_fallthru
      _
    %356 = vsyncpa [#allocation3], 1
    %357 = vsyncpa [#allocation6], 1
    %358 = vsyncpa [#allocation4], 1

</llo_original>
